<compile_context>
chip_gen: v7x
topology: tpu7x:2x2x1
jax: 0.10.0
libtpu: 0.0.40
codegen_flags: <defaults>
</compile_context>

<pallas_src>
import math
from functools import partial

import jax
import jax.numpy as jnp
from jax.experimental import pallas as pl
from jax.experimental.pallas import tpu as pltpu


# ----------------------------------------------------------------------------
# Deterministic parameter init (mirrors nn.init.orthogonal_ + zero bias)
# ----------------------------------------------------------------------------
def orthogonal_init(key, out_features, in_features, gain):
    rows, cols = out_features, in_features
    flat = jax.random.normal(key, (max(rows, cols), min(rows, cols)), dtype=jnp.float32)
    q, r = jnp.linalg.qr(flat)
    q = q * jnp.sign(jnp.diag(r))
    if rows < cols:
        q = q.T
    return (gain * q[:rows, :cols]).astype(jnp.float32)


def make_params(key, obs_dim, hidden, act_dim, init_log_std=0.0):
    g_mlp = math.sqrt(2.0)
    keys = jax.random.split(key, 6)
    return {
        # policy branch (weights stored as (in, out) = transpose of nn.Linear.weight)
        "w1p": orthogonal_init(keys[0], hidden, obs_dim, g_mlp).T,
        "b1p": jnp.zeros((1, hidden), jnp.float32),
        "w2p": orthogonal_init(keys[1], hidden, hidden, g_mlp).T,
        "b2p": jnp.zeros((1, hidden), jnp.float32),
        # value branch
        "w1v": orthogonal_init(keys[2], hidden, obs_dim, g_mlp).T,
        "b1v": jnp.zeros((1, hidden), jnp.float32),
        "w2v": orthogonal_init(keys[3], hidden, hidden, g_mlp).T,
        "b2v": jnp.zeros((1, hidden), jnp.float32),
        # action head (gain 0.01)
        "wa": orthogonal_init(keys[4], act_dim, hidden, 0.01).T,
        "ba": jnp.zeros((1, act_dim), jnp.float32),
        # value head (gain 1)
        "wv": orthogonal_init(keys[5], 1, hidden, 1.0).T,
        "bv": jnp.zeros((1, 1), jnp.float32),
        # log_std parameter
        "log_std": jnp.full((1, act_dim), init_log_std, jnp.float32),
    }


# ----------------------------------------------------------------------------
# Host-side parameter packing: 13 tensors -> 7 lane-dense arrays
#   w1   (obs_dim, 128)  : [W1p | W1v]
#   w2   (128, 128)      : block-diagonal (W2p top-left, W2v bottom-right)
#   w3a  (128, A)        : Wa in rows 0:64, zeros below (vf half contributes 0)
#   w3vl (128, 2)        : col 0 = Wv in rows 64:128; col 1 = 0
#   b12  (2, 128)        : row 0 = [b1p|b1v], row 1 = [b2p|b2v]
#   ab   (2, A)          : row 0 = ba, row 1 = exp(log_std)  (std pre-computed)
#   vb   (2, 2)          : row 0 = [bv, logp_const], row 1 = [0, 1] one-hot mask
# ----------------------------------------------------------------------------
def pack_params(params, matmul_dtype=jnp.bfloat16):
    obs_dim, hidden = params["w1p"].shape
    act_dim = params["wa"].shape[1]
    W = 2 * hidden                                            # 128 fused lane width

    w1 = jnp.concatenate([params["w1p"], params["w1v"]], axis=1)

    w2 = jnp.zeros((W, W), jnp.float32)
    w2 = w2.at[:hidden, :hidden].set(params["w2p"])
    w2 = w2.at[hidden:, hidden:].set(params["w2v"])

    w3a = jnp.zeros((W, act_dim), jnp.float32).at[:hidden, :].set(params["wa"])
    w3vl = jnp.zeros((W, 2), jnp.float32).at[hidden:, 0:1].set(params["wv"])

    b1 = jnp.concatenate([params["b1p"], params["b1v"]], axis=1)
    b2 = jnp.concatenate([params["b2p"], params["b2v"]], axis=1)
    b12 = jnp.concatenate([b1, b2], axis=0)                   # (2, 128), stays f32

    ab = jnp.concatenate([params["ba"], jnp.exp(params["log_std"])], axis=0)  # (2, A)

    logp_const = -(jnp.sum(params["log_std"])
                   + 0.5 * act_dim * jnp.log(2.0 * jnp.pi))
    vb = jnp.zeros((2, 2), jnp.float32)
    vb = vb.at[0, 0].set(params["bv"][0, 0])
    vb = vb.at[0, 1].set(logp_const)
    vb = vb.at[1, 1].set(1.0)                                  # one-hot mask for logp col

    return (w1.astype(matmul_dtype), w2.astype(matmul_dtype),
            w3a.astype(matmul_dtype), w3vl.astype(matmul_dtype),
            b12, ab, vb)


# ----------------------------------------------------------------------------
# Pallas kernel: fused MLP extractor + action/value heads + Gaussian sample
# ----------------------------------------------------------------------------
def policy_kernel(obs_ref, eps_ref, w1_ref, w2_ref, w3a_ref, w3vl_ref,
                  b12_ref, ab_ref, vb_ref, act_ref, vl_ref):
    mm = w1_ref.dtype                                         # f32 or bf16 matmul path
    obs = obs_ref[...].astype(mm)

    # layer 1 + layer 2 (pi and vf branches fused, lane-dense 128-wide matmuls)
    h = jnp.tanh(jnp.dot(obs, w1_ref[...], preferred_element_type=jnp.float32)
                 + b12_ref[0:1, :])
    latent = jnp.tanh(jnp.dot(h.astype(mm), w2_ref[...],
                              preferred_element_type=jnp.float32)
                      + b12_ref[1:2, :])
    latent = latent.astype(mm)

    eps = eps_ref[...]                                        # (TB, A), f32

    # action head: mean + std * eps  -> (TB, A), written directly (no padding)
    mean = (jnp.dot(latent, w3a_ref[...], preferred_element_type=jnp.float32)
            + ab_ref[0:1, :])                                 # + ba
    act_ref[...] = (mean + ab_ref[1:2, :] * eps).astype(act_ref.dtype)

    # value | log_prob head -> (TB, 2)
    #   col 0: value = latent_vf @ Wv + bv
    #   col 1: log_prob = logp_const - 0.5 * sum(eps^2)
    sumsq = jnp.sum(eps * eps, axis=-1, keepdims=True)        # (TB, 1)
    vl = (jnp.dot(latent, w3vl_ref[...], preferred_element_type=jnp.float32)
          + vb_ref[0:1, :])
    vl_ref[...] = (vl + vb_ref[1:2, :] * (-0.5 * sumsq)).astype(vl_ref.dtype)


def _pick_tile(batch, block_b):
    """Batch tile: multiple of 8, >=2 grid steps when batch allows (megacore)."""
    if batch <= 8:
        return batch
    tb = min(block_b, batch)
    tb = max(8, (tb // 8) * 8)
    if tb >= batch and batch >= 16:                           # split for 2 TCs on v7x
        tb = max(8, ((batch // 2) // 8) * 8)
    return tb


def policy_forward(obs, eps, packed, *, block_b=4096):
    """Returns (actions (B,A), values (B,1), log_prob (B,))."""
    w1, w2, w3a, w3vl, b12, ab, vb = packed
    B, obs_dim = obs.shape
    W = w1.shape[1]                                           # 128
    A = w3a.shape[1]

    TB = _pick_tile(B, block_b)
    grid = (pl.cdiv(B, TB),)

    flops = 2 * B * (obs_dim * W + W * W + W * (A + 2))
    bytes_accessed = int(
        obs.size * obs.dtype.itemsize + eps.size * eps.dtype.itemsize
        + B * (A + 2) * 4
        + sum(int(x.size) * x.dtype.itemsize for x in (w1, w2, w3a, w3vl, b12, ab, vb)))

    actions, vl = pl.pallas_call(
        policy_kernel,
        out_shape=(jax.ShapeDtypeStruct((B, A), jnp.float32),
                   jax.ShapeDtypeStruct((B, 2), jnp.float32)),
        grid_spec=pltpu.PrefetchScalarGridSpec(
            num_scalar_prefetch=0,
            grid=grid,
            in_specs=[
                pl.BlockSpec((TB, obs_dim), lambda i: (i, 0)),   # obs  (batch-tiled)
                pl.BlockSpec((TB, A), lambda i: (i, 0)),         # eps  (batch-tiled, no pad)
                pl.BlockSpec((obs_dim, W), lambda i: (0, 0)),    # w1   (VMEM-resident)
                pl.BlockSpec((W, W), lambda i: (0, 0)),          # w2
                pl.BlockSpec((W, A), lambda i: (0, 0)),          # w3a
                pl.BlockSpec((W, 2), lambda i: (0, 0)),          # w3vl
                pl.BlockSpec((2, W), lambda i: (0, 0)),          # b12
                pl.BlockSpec((2, A), lambda i: (0, 0)),          # ba / std
                pl.BlockSpec((2, 2), lambda i: (0, 0)),          # bv+logp_const / mask
            ],
            out_specs=[
                pl.BlockSpec((TB, A), lambda i: (i, 0)),         # actions
                pl.BlockSpec((TB, 2), lambda i: (i, 0)),         # [value | log_prob]
            ],
        ),
        compiler_params=pltpu.CompilerParams(
            dimension_semantics=("parallel",)),                  # both TCs on v7x
        cost_estimate=pl.CostEstimate(flops=flops,
                                      transcendentals=2 * B * W,
                                      bytes_accessed=bytes_accessed),
    )(obs, eps, w1, w2, w3a, w3vl, b12, ab, vb)

    values = vl[:, 0:1]
    log_prob = vl[:, 1]
    return actions, values, log_prob


# ----------------------------------------------------------------------------
# Pure-JAX reference (un-fused) for sanity checking
# ----------------------------------------------------------------------------
def policy_forward_ref(obs, eps, p):
    lpi = jnp.tanh(jnp.tanh(obs @ p["w1p"] + p["b1p"]) @ p["w2p"] + p["b2p"])
    lvf = jnp.tanh(jnp.tanh(obs @ p["w1v"] + p["b1v"]) @ p["w2v"] + p["b2v"])
    values = lvf @ p["wv"] + p["bv"]
    mean = lpi @ p["wa"] + p["ba"]
    std = jnp.exp(p["log_std"])
    actions = mean + std * eps
    logp = jnp.sum(-0.5 * (actions - mean) ** 2 / (std * std)
                   - p["log_std"] - 0.5 * jnp.log(2.0 * jnp.pi), axis=-1)
    return actions, values, logp


if __name__ == "__main__":
    B, OBS_DIM, HIDDEN, ACT_DIM = 8, 32, 64, 8

    key = jax.random.PRNGKey(0)
    k_obs, k_eps, k_par, k_obs2, k_eps2 = jax.random.split(key, 5)

    obs = jax.random.normal(k_obs, (B, OBS_DIM), dtype=jnp.float32)
    eps = jax.random.normal(k_eps, (B, ACT_DIM), dtype=jnp.float32)  # sampling noise
    params = make_params(k_par, OBS_DIM, HIDDEN, ACT_DIM, init_log_std=-0.3)

    # --- f32 matmul path (exact reproduction) ---
    packed_f32 = pack_params(params, matmul_dtype=jnp.float32)
    actions, values, log_prob = jax.block_until_ready(
        policy_forward(obs, eps, packed_f32))

    a_ref, v_ref, lp_ref = policy_forward_ref(obs, eps, params)
    assert actions.shape == (B, ACT_DIM) and values.shape == (B, 1) and log_prob.shape == (B,)
    assert jnp.allclose(actions, a_ref, atol=1e-4, rtol=1e-4)
    assert jnp.allclose(values, v_ref, atol=1e-4, rtol=1e-4)
    assert jnp.allclose(log_prob, lp_ref, atol=1e-4, rtol=1e-4)

    # --- bf16 matmul path (MXU-native on all generations; f32 accumulate) ---
    packed_bf16 = pack_params(params, matmul_dtype=jnp.bfloat16)
    a_bf, v_bf, lp_bf = jax.block_until_ready(
        policy_forward(obs, eps, packed_bf16))
    assert jnp.allclose(a_bf, a_ref, atol=2e-1)
    assert jnp.allclose(v_bf, v_ref, atol=2e-1)
    assert jnp.allclose(lp_bf, lp_ref, atol=2e-1)

    # --- multi-step grid path (exercises batch pipelining / megacore split) ---
    B2 = 64
    obs2 = jax.random.normal(k_obs2, (B2, OBS_DIM), dtype=jnp.float32)
    eps2 = jax.random.normal(k_eps2, (B2, ACT_DIM), dtype=jnp.float32)
    a2, v2, lp2 = jax.block_until_ready(
        policy_forward(obs2, eps2, packed_f32, block_b=16))
    a2_ref, v2_ref, lp2_ref = policy_forward_ref(obs2, eps2, params)
    assert jnp.allclose(a2, a2_ref, atol=1e-4, rtol=1e-4)
    assert jnp.allclose(v2, v2_ref, atol=1e-4, rtol=1e-4)
    assert jnp.allclose(lp2, lp2_ref, atol=1e-4, rtol=1e-4)

    print("KERNEL_OK")
</pallas_src>

<mosaic_0001>
module attributes {stable_mosaic.version = 11 : i64} {
  func.func @policy_kernel(%arg0: i32, %arg1: memref<8x32xf32, #tpu.memory_space<vmem>>, %arg2: memref<8x8xf32, #tpu.memory_space<vmem>>, %arg3: memref<32x128xf32, #tpu.memory_space<vmem>>, %arg4: memref<128x128xf32, #tpu.memory_space<vmem>>, %arg5: memref<128x8xf32, #tpu.memory_space<vmem>>, %arg6: memref<128x2xf32, #tpu.memory_space<vmem>>, %arg7: memref<2x128xf32, #tpu.memory_space<vmem>>, %arg8: memref<2x8xf32, #tpu.memory_space<vmem>>, %arg9: memref<2x2xf32, #tpu.memory_space<vmem>>, %arg10: memref<8x8xf32, #tpu.memory_space<vmem>>, %arg11: memref<8x2xf32, #tpu.memory_space<vmem>>) attributes {dimension_semantics = [#tpu.dimension_semantics<parallel>], iteration_bounds = array<i64: 1>, scalar_prefetch = 0 : i64, scratch_operands = 0 : i64, tpu.core_type = #tpu.core_type<tc>, window_params = [{transform_indices = @transform_0, window_bounds = array<i64: 8, 32>}, {transform_indices = @transform_1, window_bounds = array<i64: 8, 8>}, {pipeline_mode = #tpu.pipeline_mode<synchronous>, transform_indices = @transform_2, window_bounds = array<i64: 32, 128>}, {pipeline_mode = #tpu.pipeline_mode<synchronous>, transform_indices = @transform_3, window_bounds = array<i64: 128, 128>}, {pipeline_mode = #tpu.pipeline_mode<synchronous>, transform_indices = @transform_4, window_bounds = array<i64: 128, 8>}, {pipeline_mode = #tpu.pipeline_mode<synchronous>, transform_indices = @transform_5, window_bounds = array<i64: 128, 2>}, {pipeline_mode = #tpu.pipeline_mode<synchronous>, transform_indices = @transform_6, window_bounds = array<i64: 2, 128>}, {pipeline_mode = #tpu.pipeline_mode<synchronous>, transform_indices = @transform_7, window_bounds = array<i64: 2, 8>}, {pipeline_mode = #tpu.pipeline_mode<synchronous>, transform_indices = @transform_8, window_bounds = array<i64: 2, 2>}, {transform_indices = @transform_9, window_bounds = array<i64: 8, 8>}, {transform_indices = @transform_10, window_bounds = array<i64: 8, 2>}]} {
    %c0 = arith.constant 0 : index
    %c0_0 = arith.constant 0 : index
    %0 = vector.load %arg1[%c0, %c0_0] : memref<8x32xf32, #tpu.memory_space<vmem>>, vector<8x32xf32>
    %c0_1 = arith.constant 0 : index
    %c0_2 = arith.constant 0 : index
    %1 = vector.load %arg3[%c0_1, %c0_2] : memref<32x128xf32, #tpu.memory_space<vmem>>, vector<32x128xf32>
    %cst = arith.constant dense<0.000000e+00> : vector<8x128xf32>
    %2 = tpu.matmul %0, %1, %cst {dimension_numbers = #tpu.dot_dimension_numbers<[1], [0], [0], [1], [0, 0, 1, 1], [], []>} : vector<8x32xf32>, vector<32x128xf32>, vector<8x128xf32> -> vector<8x128xf32>
    %c0_3 = arith.constant 0 : index
    %c0_4 = arith.constant 0 : index
    %3 = vector.load %arg7[%c0_3, %c0_4] : memref<2x128xf32, #tpu.memory_space<vmem>>, vector<1x128xf32>
    %4 = vector.broadcast %3 : vector<1x128xf32> to vector<8x128xf32>
    %5 = arith.addf %2, %4 : vector<8x128xf32>
    %6 = math.tanh %5 : vector<8x128xf32>
    %c0_5 = arith.constant 0 : index
    %c0_6 = arith.constant 0 : index
    %7 = vector.load %arg4[%c0_5, %c0_6] : memref<128x128xf32, #tpu.memory_space<vmem>>, vector<128x128xf32>
    %cst_7 = arith.constant dense<0.000000e+00> : vector<8x128xf32>
    %8 = tpu.matmul %6, %7, %cst_7 {dimension_numbers = #tpu.dot_dimension_numbers<[1], [0], [0], [1], [0, 0, 1, 1], [], []>} : vector<8x128xf32>, vector<128x128xf32>, vector<8x128xf32> -> vector<8x128xf32>
    %c1 = arith.constant 1 : index
    %c0_8 = arith.constant 0 : index
    %9 = vector.load %arg7[%c1, %c0_8] : memref<2x128xf32, #tpu.memory_space<vmem>>, vector<1x128xf32>
    %10 = vector.broadcast %9 : vector<1x128xf32> to vector<8x128xf32>
    %11 = arith.addf %8, %10 : vector<8x128xf32>
    %12 = math.tanh %11 : vector<8x128xf32>
    %c0_9 = arith.constant 0 : index
    %c0_10 = arith.constant 0 : index
    %13 = vector.load %arg2[%c0_9, %c0_10] : memref<8x8xf32, #tpu.memory_space<vmem>>, vector<8x8xf32>
    %c0_11 = arith.constant 0 : index
    %c0_12 = arith.constant 0 : index
    %14 = vector.load %arg5[%c0_11, %c0_12] : memref<128x8xf32, #tpu.memory_space<vmem>>, vector<128x8xf32>
    %cst_13 = arith.constant dense<0.000000e+00> : vector<8x8xf32>
    %15 = tpu.matmul %12, %14, %cst_13 {dimension_numbers = #tpu.dot_dimension_numbers<[1], [0], [0], [1], [0, 0, 1, 1], [], []>} : vector<8x128xf32>, vector<128x8xf32>, vector<8x8xf32> -> vector<8x8xf32>
    %c0_14 = arith.constant 0 : index
    %c0_15 = arith.constant 0 : index
    %16 = vector.load %arg8[%c0_14, %c0_15] : memref<2x8xf32, #tpu.memory_space<vmem>>, vector<1x8xf32>
    %17 = vector.broadcast %16 : vector<1x8xf32> to vector<8x8xf32>
    %18 = arith.addf %15, %17 : vector<8x8xf32>
    %c1_16 = arith.constant 1 : index
    %c0_17 = arith.constant 0 : index
    %19 = vector.load %arg8[%c1_16, %c0_17] : memref<2x8xf32, #tpu.memory_space<vmem>>, vector<1x8xf32>
    %20 = vector.broadcast %19 : vector<1x8xf32> to vector<8x8xf32>
    %21 = arith.mulf %20, %13 : vector<8x8xf32>
    %22 = arith.addf %18, %21 : vector<8x8xf32>
    %c0_18 = arith.constant 0 : index
    %c0_19 = arith.constant 0 : index
    %23 = vector.load %arg10[%c0_18, %c0_19] : memref<8x8xf32, #tpu.memory_space<vmem>>, vector<8x8xf32>
    tpu.vector_store %arg10[%c0_18, %c0_19], %22 {strides = array<i32>} : memref<8x8xf32, #tpu.memory_space<vmem>>, vector<8x8xf32>,
    %24 = arith.mulf %13, %13 : vector<8x8xf32>
    %cst_20 = arith.constant dense<0.000000e+00> : vector<8xf32>
    %25 = vector.multi_reduction <add>, %24, %cst_20 [1] : vector<8x8xf32> to vector<8xf32>
    %26 = vector.shape_cast %25 : vector<8xf32> to vector<8x1xf32>
    %c0_21 = arith.constant 0 : index
    %c0_22 = arith.constant 0 : index
    %27 = vector.load %arg6[%c0_21, %c0_22] : memref<128x2xf32, #tpu.memory_space<vmem>>, vector<128x2xf32>
    %cst_23 = arith.constant dense<0.000000e+00> : vector<8x2xf32>
    %28 = tpu.matmul %12, %27, %cst_23 {dimension_numbers = #tpu.dot_dimension_numbers<[1], [0], [0], [1], [0, 0, 1, 1], [], []>} : vector<8x128xf32>, vector<128x2xf32>, vector<8x2xf32> -> vector<8x2xf32>
    %c0_24 = arith.constant 0 : index
    %c0_25 = arith.constant 0 : index
    %29 = vector.load %arg9[%c0_24, %c0_25] : memref<2x2xf32, #tpu.memory_space<vmem>>, vector<1x2xf32>
    %30 = vector.broadcast %29 : vector<1x2xf32> to vector<8x2xf32>
    %31 = arith.addf %28, %30 : vector<8x2xf32>
    %c1_26 = arith.constant 1 : index
    %c0_27 = arith.constant 0 : index
    %32 = vector.load %arg9[%c1_26, %c0_27] : memref<2x2xf32, #tpu.memory_space<vmem>>, vector<1x2xf32>
    %cst_28 = arith.constant -5.000000e-01 : f32
    %33 = vector.broadcast %cst_28 : f32 to vector<8x1xf32>
    %34 = arith.mulf %33, %26 : vector<8x1xf32>
    %35 = vector.broadcast %32 : vector<1x2xf32> to vector<8x2xf32>
    %36 = vector.broadcast %34 : vector<8x1xf32> to vector<8x2xf32>
    %37 = arith.mulf %35, %36 : vector<8x2xf32>
    %38 = arith.addf %31, %37 : vector<8x2xf32>
    %c0_29 = arith.constant 0 : index
    %c0_30 = arith.constant 0 : index
    %39 = vector.load %arg11[%c0_29, %c0_30] : memref<8x2xf32, #tpu.memory_space<vmem>>, vector<8x2xf32>
    tpu.vector_store %arg11[%c0_29, %c0_30], %38 {strides = array<i32>} : memref<8x2xf32, #tpu.memory_space<vmem>>, vector<8x2xf32>,
    return
  }
  func.func @transform_0(%arg0: i32) -> (i32, i32) {
    %c0_i32 = arith.constant 0 : i32
    %c0_i32_0 = arith.constant 0 : i32
    return %arg0, %c0_i32 : i32, i32
  }
  func.func @transform_1(%arg0: i32) -> (i32, i32) {
    %c0_i32 = arith.constant 0 : i32
    %c0_i32_0 = arith.constant 0 : i32
    return %arg0, %c0_i32 : i32, i32
  }
  func.func @transform_2(%arg0: i32) -> (i32, i32) {
    %c0_i32 = arith.constant 0 : i32
    %c0_i32_0 = arith.constant 0 : i32
    %c0_i32_1 = arith.constant 0 : i32
    return %c0_i32, %c0_i32_0 : i32, i32
  }
  func.func @transform_3(%arg0: i32) -> (i32, i32) {
    %c0_i32 = arith.constant 0 : i32
    %c0_i32_0 = arith.constant 0 : i32
    %c0_i32_1 = arith.constant 0 : i32
    return %c0_i32, %c0_i32_0 : i32, i32
  }
  func.func @transform_4(%arg0: i32) -> (i32, i32) {
    %c0_i32 = arith.constant 0 : i32
    %c0_i32_0 = arith.constant 0 : i32
    %c0_i32_1 = arith.constant 0 : i32
    return %c0_i32, %c0_i32_0 : i32, i32
  }
  func.func @transform_5(%arg0: i32) -> (i32, i32) {
    %c0_i32 = arith.constant 0 : i32
    %c0_i32_0 = arith.constant 0 : i32
    %c0_i32_1 = arith.constant 0 : i32
    return %c0_i32, %c0_i32_0 : i32, i32
  }
  func.func @transform_6(%arg0: i32) -> (i32, i32) {
    %c0_i32 = arith.constant 0 : i32
    %c0_i32_0 = arith.constant 0 : i32
    %c0_i32_1 = arith.constant 0 : i32
    return %c0_i32, %c0_i32_0 : i32, i32
  }
  func.func @transform_7(%arg0: i32) -> (i32, i32) {
    %c0_i32 = arith.constant 0 : i32
    %c0_i32_0 = arith.constant 0 : i32
    %c0_i32_1 = arith.constant 0 : i32
    return %c0_i32, %c0_i32_0 : i32, i32
  }
  func.func @transform_8(%arg0: i32) -> (i32, i32) {
    %c0_i32 = arith.constant 0 : i32
    %c0_i32_0 = arith.constant 0 : i32
    %c0_i32_1 = arith.constant 0 : i32
    return %c0_i32, %c0_i32_0 : i32, i32
  }
  func.func @transform_9(%arg0: i32) -> (i32, i32) {
    %c0_i32 = arith.constant 0 : i32
    %c0_i32_0 = arith.constant 0 : i32
    return %arg0, %c0_i32 : i32, i32
  }
  func.func @transform_10(%arg0: i32) -> (i32, i32) {
    %c0_i32 = arith.constant 0 : i32
    %c0_i32_0 = arith.constant 0 : i32
    return %arg0, %c0_i32 : i32, i32
  }
}

</mosaic_0001>

<llo_original>
// kernel: tpu_custom_call.1
$region0: #{tpu_custom_call.1}
  #allocation0 [shape = 'u32[]', space=smem, size = 0x4, offset = 0x4, fixed_abs, tag = 'smem constant byte address 0x4 - core index']
  #allocation1 [shape = 'u32[144,128]{1,0:T(1,128)}', space=vmem, size = 0x12000, scoped, tag = 'internal scratch']
  %s0 = inlined_call_operand.vmem [shape: f32[8,32], index: 0, kind: input, shape index: {}]
  %s1 = inlined_call_operand.vmem [shape: f32[8,8], index: 1, kind: input, shape index: {}]
  %s2 = inlined_call_operand.vmem [shape: f32[32,128], index: 2, kind: input, shape index: {}]
  %s3 = inlined_call_operand.vmem [shape: f32[128,128], index: 3, kind: input, shape index: {}]
  %s4 = inlined_call_operand.vmem [shape: f32[128,8], index: 4, kind: input, shape index: {}]
  %s5 = inlined_call_operand.vmem [shape: f32[128,2], index: 5, kind: input, shape index: {}]
  %s6 = inlined_call_operand.vmem [shape: f32[2,128], index: 6, kind: input, shape index: {}]
  %s7 = inlined_call_operand.vmem [shape: f32[2,8], index: 7, kind: input, shape index: {}]
  %s8 = inlined_call_operand.vmem [shape: f32[2,2], index: 8, kind: input, shape index: {}]
  %s9 = inlined_call_operand.hbm [shape: f32[8,8], index: 9, kind: output, shape index: {0}]
  %s10 = inlined_call_operand.vmem [shape: f32[8,2], index: 10, kind: output, shape index: {1}]
  %11 = xla_tuple %s9, %s10
  %s12 = sld [smem:[#allocation0]]
  $region54: #{tpu_custom_call.1} parent=0
    _
  %s14 = ssub.s32 1, %s12
  %s15 = scalar_select 0, %s14, %s12
  $region1: #{tpu_custom_call.1} parent=0
    #allocation2 [shape = 'u8[4096]{0}', space=vmem, size = 0x1000, scoped, tag = 'output window, operand 0, single buffered']
    #allocation3 [shape = 's32[1]{0}', space=sflag, size = 0x4, scoped, tag = 'scoped memory for tpu_custom_call.1']
    %16 = vsyncpa [#allocation3], 0
    // Predicated region
    $region2: #{tpu_custom_call.1} parent=1 // pred_check
      _
    $region3: #{tpu_custom_call.1} parent=1 // pred_check_branch
      %18 = sbr.rel (0) target = $region5
    $region4: #{tpu_custom_call.1} parent=1 // pred_region
      _
    $region5: #{tpu_custom_call.1} parent=1 // pred_fallthru
      _
    // Predicated region
    $region6: #{tpu_custom_call.1} parent=1 // pred_check
      _
    $region7: #{tpu_custom_call.1} parent=1 // pred_check_branch
      %20 = sbr.rel (0) target = $region9
    $region8: #{tpu_custom_call.1} parent=1 // pred_region
      _
    $region9: #{tpu_custom_call.1} parent=1 // pred_fallthru
      _
    // Predicated region
    $region10: #{tpu_custom_call.1} parent=1 // pred_check
      _
    $region11: #{tpu_custom_call.1} parent=1 // pred_check_branch
      %22 = sbr.rel (0) target = $region13
    $region12: #{tpu_custom_call.1} parent=1 // pred_region
      _
    $region13: #{tpu_custom_call.1} parent=1 // pred_fallthru
      _
    // Predicated region
    $region14: #{tpu_custom_call.1} parent=1 // pred_check
      _
    $region15: #{tpu_custom_call.1} parent=1 // pred_check_branch
      %24 = sbr.rel (0) target = $region17
    $region16: #{tpu_custom_call.1} parent=1 // pred_region
      _
    $region17: #{tpu_custom_call.1} parent=1 // pred_fallthru
      _
    // Predicated region
    $region18: #{tpu_custom_call.1} parent=1 // pred_check
      _
    $region19: #{tpu_custom_call.1} parent=1 // pred_check_branch
      %26 = sbr.rel (0) target = $region21
    $region20: #{tpu_custom_call.1} parent=1 // pred_region
      _
    $region21: #{tpu_custom_call.1} parent=1 // pred_fallthru
      _
    // Predicated region
    $region22: #{tpu_custom_call.1} parent=1 // pred_check
      _
    $region23: #{tpu_custom_call.1} parent=1 // pred_check_branch
      %28 = sbr.rel (0) target = $region25
    $region24: #{tpu_custom_call.1} parent=1 // pred_region
      _
    $region25: #{tpu_custom_call.1} parent=1 // pred_fallthru
      _
    // Predicated region
    $region26: #{tpu_custom_call.1} parent=1 // pred_check
      _
    $region27: #{tpu_custom_call.1} parent=1 // pred_check_branch
      %30 = sbr.rel (0) target = $region29
    $region28: #{tpu_custom_call.1} parent=1 // pred_region
      _
    $region29: #{tpu_custom_call.1} parent=1 // pred_fallthru
      _
    // Predicated region
    $region30: #{tpu_custom_call.1} parent=1 // pred_check
      _
    $region31: #{tpu_custom_call.1} parent=1 // pred_check_branch
      %32 = sbr.rel (0) target = $region33
    $region32: #{tpu_custom_call.1} parent=1 // pred_region
      _
    $region33: #{tpu_custom_call.1} parent=1 // pred_fallthru
      _
    // Predicated region
    $region34: #{tpu_custom_call.1} parent=1 // pred_check
      _
    $region35: #{tpu_custom_call.1} parent=1 // pred_check_branch
      %34 = sbr.rel (0) target = $region37
    $region36: #{tpu_custom_call.1} parent=1 // pred_region
      _
    $region37: #{tpu_custom_call.1} parent=1 // pred_fallthru
      _
    %v35 = vld [vmem:[%s0] sm:$0xff]
    %v36 = vld [vmem:[%s2] sm:$0xff]
    %v37 = vld [vmem:[%s2 + $0x8] sm:$0xff]
    %v38 = vld [vmem:[%s2 + $0x10] sm:$0xff]
    %v39 = vld [vmem:[%s2 + $0x18] sm:$0xff]
    %v40 = vld [vmem:[%s6] sm:$0x1]
    %v41 = vlaneseq
    %v42 = vshrl.u32 %v41, 7
    %v43 = vsub.s32 0, %v42
    %v44 = vrot.slane %v40, %v43
    %vm45 = vcmask 261120
    %v47 = vsel %vm45, %v35, 0
    %49 = vmatprep.subr.mxu0 0.0
    %50 = vmatpush1.msra.mxu0 %v36
    %51 = vmatprep.subr.mxu0 0.0
    %52 = vmatpush1.msra.mxu0 %v37
    %53 = vmatprep.subr.mxu0 0.0
    %54 = vmatpush1.msra.mxu0 %v38
    %55 = vmatprep.subr.mxu0 0.0
    %56 = vmatpush1.msra.mxu0 %v39
    %57 = vmatprep.subr.mxu0 0.0
    %58 = vmatpush1.msra.mxu0 0.0
    %59 = vmatprep.subr.mxu0 0.0
    %60 = vmatpush1.msra.mxu0 0.0
    %61 = vmatprep.subr.mxu0 0.0
    %62 = vmatpush1.msra.mxu0 0.0
    %63 = vmatprep.subr.mxu0 0.0
    %64 = vmatpush1.msra.mxu0 0.0
    %65 = vmatprep.subr.mxu0 0.0
    %66 = vmatpush1.msra.mxu0 0.0
    %67 = vmatprep.subr.mxu0 0.0
    %68 = vmatpush1.msra.mxu0 0.0
    %69 = vmatprep.subr.mxu0 0.0
    %70 = vmatpush1.msra.mxu0 0.0
    %71 = vmatprep.subr.mxu0 0.0
    %72 = vmatpush1.msra.mxu0 0.0
    %73 = vmatprep.subr.mxu0 0.0
    %74 = vmatpush1.msra.mxu0 0.0
    %75 = vmatprep.subr.mxu0 0.0
    %76 = vmatpush1.msra.mxu0 0.0
    %77 = vmatprep.subr.mxu0 0.0
    %78 = vmatpush1.msra.mxu0 0.0
    %79 = vmatprep.subr.mxu0 0.0
    %80 = vmatpush1.msra.mxu0 0.0
    %81 = vmatprep.subr.mxu0 0.0
    %82 = vmatpush1.msra.mxu0 0.0
    %83 = vmatprep.subr.mxu0 0.0
    %84 = vmatpush1.msra.mxu0 0.0
    %85 = vmatprep.subr.mxu0 0.0
    %86 = vmatpush1.msra.mxu0 0.0
    %87 = vmatprep.subr.mxu0 0.0
    %88 = vmatpush1.msra.mxu0 0.0
    %89 = vmatprep.subr.mxu0 0.0
    %90 = vmatpush1.msra.mxu0 0.0
    %91 = vmatprep.subr.mxu0 0.0
    %92 = vmatpush1.msra.mxu0 0.0
    %93 = vmatprep.subr.mxu0 0.0
    %94 = vmatpush1.msra.mxu0 0.0
    %95 = vmatprep.subr.mxu0 0.0
    %96 = vmatpush1.msra.mxu0 0.0
    %97 = vmatprep.subr.mxu0 0.0
    %98 = vmatpush1.msra.mxu0 0.0
    %99 = vmatprep.subr.mxu0 0.0
    %100 = vmatpush1.msra.mxu0 0.0
    %101 = vmatprep.subr.mxu0 0.0
    %102 = vmatpush1.msra.mxu0 0.0
    %103 = vmatprep.subr.mxu0 0.0
    %104 = vmatpush1.msra.mxu0 0.0
    %105 = vmatprep.subr.mxu0 0.0
    %106 = vmatpush1.msra.mxu0 0.0
    %107 = vmatprep.subr.mxu0 0.0
    %108 = vmatpush1.msra.mxu0 0.0
    %109 = vmatprep.subr.mxu0 0.0
    %110 = vmatpush1.msra.mxu0 0.0
    %111 = vmatprep.subr.mxu0 0.0
    %112 = vmatpush1.msra.mxu0 0.0
    %113 = vmatprep.mubr.f32.mxu0 0.0
    %114 = vmatmul.mubr.f32.gmra.mrb[0].mxu0 %v47
    %v115 = vpop.f32.mrb[0].mxu0
    %v116 = vadd.f32 %v44, %v115
    %v117 = vpop.f32.mrb[0].mxu0
    %118 = vdwg.mxu0
    %v119 = vtanh.pop %v116
    %v120 = vld [vmem:[%s3] sm:$0xff]
    %v121 = vld [vmem:[%s3 + $0x8] sm:$0xff]
    %v122 = vld [vmem:[%s3 + $0x10] sm:$0xff]
    %v123 = vld [vmem:[%s3 + $0x18] sm:$0xff]
    %v124 = vld [vmem:[%s3 + $0x20] sm:$0xff]
    %v125 = vld [vmem:[%s3 + $0x28] sm:$0xff]
    %v126 = vld [vmem:[%s3 + $0x30] sm:$0xff]
    %v127 = vld [vmem:[%s3 + $0x38] sm:$0xff]
    %v128 = vld [vmem:[%s3 + $0x40] sm:$0xff]
    %v129 = vld [vmem:[%s3 + $0x48] sm:$0xff]
    %v130 = vld [vmem:[%s3 + $0x50] sm:$0xff]
    %v131 = vld [vmem:[%s3 + $0x58] sm:$0xff]
    %v132 = vld [vmem:[%s3 + $0x60] sm:$0xff]
    %v133 = vld [vmem:[%s3 + $0x68] sm:$0xff]
    %v134 = vld [vmem:[%s3 + $0x70] sm:$0xff]
    %v135 = vld [vmem:[%s3 + $0x78] sm:$0xff]
    %v136 = vld [vmem:[%s6 + $0x1] sm:$0x1]
    %v137 = vlaneseq
    %v138 = vshrl.u32 %v137, 7
    %v139 = vsub.s32 0, %v138
    %v140 = vrot.slane %v136, %v139
    %141 = vmatprep.subr.mxu0 0.0
    %142 = vmatpush1.msra.mxu0 %v120
    %143 = vmatprep.subr.mxu0 0.0
    %144 = vmatpush1.msra.mxu0 %v121
    %145 = vmatprep.subr.mxu0 0.0
    %146 = vmatpush1.msra.mxu0 %v122
    %147 = vmatprep.subr.mxu0 0.0
    %148 = vmatpush1.msra.mxu0 %v123
    %149 = vmatprep.subr.mxu0 0.0
    %150 = vmatpush1.msra.mxu0 %v124
    %151 = vmatprep.subr.mxu0 0.0
    %152 = vmatpush1.msra.mxu0 %v125
    %153 = vmatprep.subr.mxu0 0.0
    %154 = vmatpush1.msra.mxu0 %v126
    %155 = vmatprep.subr.mxu0 0.0
    %156 = vmatpush1.msra.mxu0 %v127
    %157 = vmatprep.subr.mxu0 0.0
    %158 = vmatpush1.msra.mxu0 %v128
    %159 = vmatprep.subr.mxu0 0.0
    %160 = vmatpush1.msra.mxu0 %v129
    %161 = vmatprep.subr.mxu0 0.0
    %162 = vmatpush1.msra.mxu0 %v130
    %163 = vmatprep.subr.mxu0 0.0
    %164 = vmatpush1.msra.mxu0 %v131
    %165 = vmatprep.subr.mxu0 0.0
    %166 = vmatpush1.msra.mxu0 %v132
    %167 = vmatprep.subr.mxu0 0.0
    %168 = vmatpush1.msra.mxu0 %v133
    %169 = vmatprep.subr.mxu0 0.0
    %170 = vmatpush1.msra.mxu0 %v134
    %171 = vmatprep.subr.mxu0 0.0
    %172 = vmatpush1.msra.mxu0 %v135
    %173 = vmatprep.subr.mxu0 0.0
    %174 = vmatpush1.msra.mxu0 0.0
    %175 = vmatprep.subr.mxu0 0.0
    %176 = vmatpush1.msra.mxu0 0.0
    %177 = vmatprep.subr.mxu0 0.0
    %178 = vmatpush1.msra.mxu0 0.0
    %179 = vmatprep.subr.mxu0 0.0
    %180 = vmatpush1.msra.mxu0 0.0
    %181 = vmatprep.subr.mxu0 0.0
    %182 = vmatpush1.msra.mxu0 0.0
    %183 = vmatprep.subr.mxu0 0.0
    %184 = vmatpush1.msra.mxu0 0.0
    %185 = vmatprep.subr.mxu0 0.0
    %186 = vmatpush1.msra.mxu0 0.0
    %187 = vmatprep.subr.mxu0 0.0
    %188 = vmatpush1.msra.mxu0 0.0
    %189 = vmatprep.subr.mxu0 0.0
    %190 = vmatpush1.msra.mxu0 0.0
    %191 = vmatprep.subr.mxu0 0.0
    %192 = vmatpush1.msra.mxu0 0.0
    %193 = vmatprep.subr.mxu0 0.0
    %194 = vmatpush1.msra.mxu0 0.0
    %195 = vmatprep.subr.mxu0 0.0
    %196 = vmatpush1.msra.mxu0 0.0
    %197 = vmatprep.subr.mxu0 0.0
    %198 = vmatpush1.msra.mxu0 0.0
    %199 = vmatprep.subr.mxu0 0.0
    %200 = vmatpush1.msra.mxu0 0.0
    %201 = vmatprep.subr.mxu0 0.0
    %202 = vmatpush1.msra.mxu0 0.0
    %203 = vmatprep.subr.mxu0 0.0
    %204 = vmatpush1.msra.mxu0 0.0
    %205 = vmatprep.mubr.f32.mxu0 0.0
    %206 = vmatmul.mubr.f32.gmra.mrb[0].mxu0 %v119
    %v207 = vpop.f32.mrb[0].mxu0
    %v208 = vadd.f32 %v140, %v207
    %v209 = vpop.f32.mrb[0].mxu0
    %210 = vdwg.mxu0
    %v211 = vtanh.pop %v208
    %v212 = vld [vmem:[%s1] sm:$0xff]
    %v213 = vld [vmem:[%s4] sm:$0xff]
    %v214 = vld [vmem:[%s4 + $0x8] sm:$0xff]
    %v215 = vld [vmem:[%s4 + $0x10] sm:$0xff]
    %v216 = vld [vmem:[%s4 + $0x18] sm:$0xff]
    %v217 = vld [vmem:[%s4 + $0x20] sm:$0xff]
    %v218 = vld [vmem:[%s4 + $0x28] sm:$0xff]
    %v219 = vld [vmem:[%s4 + $0x30] sm:$0xff]
    %v220 = vld [vmem:[%s4 + $0x38] sm:$0xff]
    %v221 = vld [vmem:[%s4 + $0x40] sm:$0xff]
    %v222 = vld [vmem:[%s4 + $0x48] sm:$0xff]
    %v223 = vld [vmem:[%s4 + $0x50] sm:$0xff]
    %v224 = vld [vmem:[%s4 + $0x58] sm:$0xff]
    %v225 = vld [vmem:[%s4 + $0x60] sm:$0xff]
    %v226 = vld [vmem:[%s4 + $0x68] sm:$0xff]
    %v227 = vld [vmem:[%s4 + $0x70] sm:$0xff]
    %v228 = vld [vmem:[%s4 + $0x78] sm:$0xff]
    %v229 = vld [vmem:[%s7] sm:$0x1]
    %v230 = vlaneseq
    %v231 = vshrl.u32 %v230, 7
    %v232 = vsub.s32 0, %v231
    %v233 = vrot.slane %v229, %v232
    %234 = vmatprep.subr.mxu0 0.0
    %235 = vmatpush1.msra.mxu0 %v213
    %236 = vmatprep.subr.mxu0 0.0
    %237 = vmatpush1.msra.mxu0 %v214
    %238 = vmatprep.subr.mxu0 0.0
    %239 = vmatpush1.msra.mxu0 %v215
    %240 = vmatprep.subr.mxu0 0.0
    %241 = vmatpush1.msra.mxu0 %v216
    %242 = vmatprep.subr.mxu0 0.0
    %243 = vmatpush1.msra.mxu0 %v217
    %244 = vmatprep.subr.mxu0 0.0
    %245 = vmatpush1.msra.mxu0 %v218
    %246 = vmatprep.subr.mxu0 0.0
    %247 = vmatpush1.msra.mxu0 %v219
    %248 = vmatprep.subr.mxu0 0.0
    %249 = vmatpush1.msra.mxu0 %v220
    %250 = vmatprep.subr.mxu0 0.0
    %251 = vmatpush1.msra.mxu0 %v221
    %252 = vmatprep.subr.mxu0 0.0
    %253 = vmatpush1.msra.mxu0 %v222
    %254 = vmatprep.subr.mxu0 0.0
    %255 = vmatpush1.msra.mxu0 %v223
    %256 = vmatprep.subr.mxu0 0.0
    %257 = vmatpush1.msra.mxu0 %v224
    %258 = vmatprep.subr.mxu0 0.0
    %259 = vmatpush1.msra.mxu0 %v225
    %260 = vmatprep.subr.mxu0 0.0
    %261 = vmatpush1.msra.mxu0 %v226
    %262 = vmatprep.subr.mxu0 0.0
    %263 = vmatpush1.msra.mxu0 %v227
    %264 = vmatprep.subr.mxu0 0.0
    %265 = vmatpush1.msra.mxu0 %v228
    %266 = vmatprep.subr.mxu0 0.0
    %267 = vmatpush1.msra.mxu0 0.0
    %268 = vmatprep.subr.mxu0 0.0
    %269 = vmatpush1.msra.mxu0 0.0
    %270 = vmatprep.subr.mxu0 0.0
    %271 = vmatpush1.msra.mxu0 0.0
    %272 = vmatprep.subr.mxu0 0.0
    %273 = vmatpush1.msra.mxu0 0.0
    %274 = vmatprep.subr.mxu0 0.0
    %275 = vmatpush1.msra.mxu0 0.0
    %276 = vmatprep.subr.mxu0 0.0
    %277 = vmatpush1.msra.mxu0 0.0
    %278 = vmatprep.subr.mxu0 0.0
    %279 = vmatpush1.msra.mxu0 0.0
    %280 = vmatprep.subr.mxu0 0.0
    %281 = vmatpush1.msra.mxu0 0.0
    %282 = vmatprep.subr.mxu0 0.0
    %283 = vmatpush1.msra.mxu0 0.0
    %284 = vmatprep.subr.mxu0 0.0
    %285 = vmatpush1.msra.mxu0 0.0
    %286 = vmatprep.subr.mxu0 0.0
    %287 = vmatpush1.msra.mxu0 0.0
    %288 = vmatprep.subr.mxu0 0.0
    %289 = vmatpush1.msra.mxu0 0.0
    %290 = vmatprep.subr.mxu0 0.0
    %291 = vmatpush1.msra.mxu0 0.0
    %292 = vmatprep.subr.mxu0 0.0
    %293 = vmatpush1.msra.mxu0 0.0
    %294 = vmatprep.subr.mxu0 0.0
    %295 = vmatpush1.msra.mxu0 0.0
    %296 = vmatprep.subr.mxu0 0.0
    %297 = vmatpush1.msra.mxu0 0.0
    %298 = vmatprep.mubr.f32.mxu0 0.0
    %299 = vmatmul.mubr.f32.gmra.mrb[0].mxu0 %v211
    %v300 = vpop.f32.mrb[0].mxu0
    %v301 = vadd.f32 %v233, %v300
    %v302 = vpop.f32.mrb[0].mxu0
    %303 = vdwg.mxu0
    %v304 = vld [vmem:[%s7 + $0x1] sm:$0x1]
    %v305 = vlaneseq
    %v306 = vshrl.u32 %v305, 7
    %v307 = vsub.s32 0, %v306
    %v308 = vrot.slane %v304, %v307
    %v309 = vmul.f32 %v308, %v212
    %v310 = vadd.f32 %v301, %v309
    %vm311 = vcmask 64512
    %312 = vst.msk [vmem:[#allocation2] sm:$0xff] %vm311, %v310
    %v313 = vmul.f32 %v212, %v212
    %v314 = vsel %vm311, %v313, 0.0
    %315 = vadd.xlane.f32.xlu0 %v314
    %v316 = vpop.xlane.xlu0 %315
    %v317 = vld [vmem:[%s5] sm:$0xff]
    %v318 = vld [vmem:[%s5 + $0x8] sm:$0xff]
    %v319 = vld [vmem:[%s5 + $0x10] sm:$0xff]
    %v320 = vld [vmem:[%s5 + $0x18] sm:$0xff]
    %v321 = vld [vmem:[%s5 + $0x20] sm:$0xff]
    %v322 = vld [vmem:[%s5 + $0x28] sm:$0xff]
    %v323 = vld [vmem:[%s5 + $0x30] sm:$0xff]
    %v324 = vld [vmem:[%s5 + $0x38] sm:$0xff]
    %v325 = vld [vmem:[%s5 + $0x40] sm:$0xff]
    %v326 = vld [vmem:[%s5 + $0x48] sm:$0xff]
    %v327 = vld [vmem:[%s5 + $0x50] sm:$0xff]
    %v328 = vld [vmem:[%s5 + $0x58] sm:$0xff]
    %v329 = vld [vmem:[%s5 + $0x60] sm:$0xff]
    %v330 = vld [vmem:[%s5 + $0x68] sm:$0xff]
    %v331 = vld [vmem:[%s5 + $0x70] sm:$0xff]
    %v332 = vld [vmem:[%s5 + $0x78] sm:$0xff]
    %v333 = vld [vmem:[%s8] sm:$0x1]
    %v334 = vlaneseq
    %v335 = vshrl.u32 %v334, 7
    %v336 = vsub.s32 0, %v335
    %v337 = vrot.slane %v333, %v336
    %338 = vmatprep.subr.mxu0 0.0
    %339 = vmatpush1.msra.mxu0 %v317
    %340 = vmatprep.subr.mxu0 0.0
    %341 = vmatpush1.msra.mxu0 %v318
    %342 = vmatprep.subr.mxu0 0.0
    %343 = vmatpush1.msra.mxu0 %v319
    %344 = vmatprep.subr.mxu0 0.0
    %345 = vmatpush1.msra.mxu0 %v320
    %346 = vmatprep.subr.mxu0 0.0
    %347 = vmatpush1.msra.mxu0 %v321
    %348 = vmatprep.subr.mxu0 0.0
    %349 = vmatpush1.msra.mxu0 %v322
    %350 = vmatprep.subr.mxu0 0.0
    %351 = vmatpush1.msra.mxu0 %v323
    %352 = vmatprep.subr.mxu0 0.0
    %353 = vmatpush1.msra.mxu0 %v324
    %354 = vmatprep.subr.mxu0 0.0
    %355 = vmatpush1.msra.mxu0 %v325
    %356 = vmatprep.subr.mxu0 0.0
    %357 = vmatpush1.msra.mxu0 %v326
    %358 = vmatprep.subr.mxu0 0.0
    %359 = vmatpush1.msra.mxu0 %v327
    %360 = vmatprep.subr.mxu0 0.0
    %361 = vmatpush1.msra.mxu0 %v328
    %362 = vmatprep.subr.mxu0 0.0
    %363 = vmatpush1.msra.mxu0 %v329
    %364 = vmatprep.subr.mxu0 0.0
    %365 = vmatpush1.msra.mxu0 %v330
    %366 = vmatprep.subr.mxu0 0.0
    %367 = vmatpush1.msra.mxu0 %v331
    %368 = vmatprep.subr.mxu0 0.0
    %369 = vmatpush1.msra.mxu0 %v332
    %370 = vmatprep.subr.mxu0 0.0
    %371 = vmatpush1.msra.mxu0 0.0
    %372 = vmatprep.subr.mxu0 0.0
    %373 = vmatpush1.msra.mxu0 0.0
    %374 = vmatprep.subr.mxu0 0.0
    %375 = vmatpush1.msra.mxu0 0.0
    %376 = vmatprep.subr.mxu0 0.0
    %377 = vmatpush1.msra.mxu0 0.0
    %378 = vmatprep.subr.mxu0 0.0
    %379 = vmatpush1.msra.mxu0 0.0
    %380 = vmatprep.subr.mxu0 0.0
    %381 = vmatpush1.msra.mxu0 0.0
    %382 = vmatprep.subr.mxu0 0.0
    %383 = vmatpush1.msra.mxu0 0.0
    %384 = vmatprep.subr.mxu0 0.0
    %385 = vmatpush1.msra.mxu0 0.0
    %386 = vmatprep.subr.mxu0 0.0
    %387 = vmatpush1.msra.mxu0 0.0
    %388 = vmatprep.subr.mxu0 0.0
    %389 = vmatpush1.msra.mxu0 0.0
    %390 = vmatprep.subr.mxu0 0.0
    %391 = vmatpush1.msra.mxu0 0.0
    %392 = vmatprep.subr.mxu0 0.0
    %393 = vmatpush1.msra.mxu0 0.0
    %394 = vmatprep.subr.mxu0 0.0
    %395 = vmatpush1.msra.mxu0 0.0
    %396 = vmatprep.subr.mxu0 0.0
    %397 = vmatpush1.msra.mxu0 0.0
    %398 = vmatprep.subr.mxu0 0.0
    %399 = vmatpush1.msra.mxu0 0.0
    %400 = vmatprep.subr.mxu0 0.0
    %401 = vmatpush1.msra.mxu0 0.0
    %402 = vmatprep.mubr.f32.mxu0 0.0
    %403 = vmatmul.mubr.f32.gmra.mrb[0].mxu0 %v211
    %v404 = vpop.f32.mrb[0].mxu0
    %v405 = vadd.f32 %v337, %v404
    %v406 = vpop.f32.mrb[0].mxu0
    %407 = vdwg.mxu0
    %v408 = vld [vmem:[%s8 + $0x1] sm:$0x1]
    %v409 = vmul.f32 %v316, -0.5
    %v410 = vlaneseq
    %v411 = vshrl.u32 %v410, 7
    %v412 = vsub.s32 0, %v411
    %v413 = vrot.slane %v408, %v412
    %v414 = vmul.f32 %v413, %v409
    %v415 = vadd.f32 %v405, %v414
    %vm416 = vcmask 15360
    %417 = vst.msk [vmem:[%s10] sm:$0xff] %vm416, %v415
    // Predicated region
    $region38: #{tpu_custom_call.1} parent=1 // pred_check
      _
    $region39: #{tpu_custom_call.1} parent=1 // pred_check_branch
      %419 = sbr.rel (0) target = $region41
    $region40: #{tpu_custom_call.1} parent=1 // pred_region
      %s421 = ssub.s32 128, 128
      %422 = vsyncadd [#allocation3], %s421
      %s424 = sshll.u32 [#allocation2], 4
      %s425 = int_to_ptr.vmem [resolvable:$true] %s424
      %427 = dma.vmem_to_hbm [thread:$0]  %s425, 128, %s9, [#allocation3]
    $region41: #{tpu_custom_call.1} parent=1 // pred_fallthru
      _
    // Predicated region
    $region42: #{tpu_custom_call.1} parent=1 // pred_check
      _
    $region43: #{tpu_custom_call.1} parent=1 // pred_check_branch
      %429 = sbr.rel (0) target = $region45
    $region44: #{tpu_custom_call.1} parent=1 // pred_region
      _
    $region45: #{tpu_custom_call.1} parent=1 // pred_fallthru
      _
    // Predicated region
    $region46: #{tpu_custom_call.1} parent=1 // pred_check
      _
    $region47: #{tpu_custom_call.1} parent=1 // pred_check_branch
      %431 = sbr.rel (0) target = $region49
    $region48: #{tpu_custom_call.1} parent=1 // pred_region
      %432 = dma.done [#allocation3], 128
    $region49: #{tpu_custom_call.1} parent=1 // pred_fallthru
      _
    // Predicated region
    $region50: #{tpu_custom_call.1} parent=1 // pred_check
      _
    $region51: #{tpu_custom_call.1} parent=1 // pred_check_branch
      %434 = sbr.rel (0) target = $region53
    $region52: #{tpu_custom_call.1} parent=1 // pred_region
      _
    $region53: #{tpu_custom_call.1} parent=1 // pred_fallthru
      _
    %435 = vsyncpa [#allocation3], 1

</llo_original>
